<compile_context>
chip_gen: v7x
topology: tpu7x:2x2x1
jax: 0.10.0
libtpu: 0.0.40
codegen_flags: <defaults>
</compile_context>

<pallas_src>
import math

import jax
import jax.numpy as jnp
from jax.experimental import pallas as pl
from jax.experimental.pallas import tpu as pltpu


def _round_up(a: int, b: int) -> int:
    return ((a + b - 1) // b) * b


def dense_kernel(x_ref, w_ref, b_ref, o_ref, acc_ref):
    # x_ref: (tm, tk), w_ref: (tk, tn), b_ref: (1, tn),
    # o_ref: (tm, tn),  acc_ref: (tm, tn) f32 scratch (resident across K axis).
    @pl.when(pl.program_id(2) == 0)
    def _():
        acc_ref[...] = jnp.zeros_like(acc_ref)

    acc_ref[...] += jnp.dot(
        x_ref[...], w_ref[...], preferred_element_type=jnp.float32
    )

    @pl.when(pl.program_id(2) == pl.num_programs(2) - 1)
    def _():
        out = acc_ref[...] + b_ref[...]          # broadcast (1, tn) over rows
        o_ref[...] = jnp.maximum(out, 0.0).astype(o_ref.dtype)


def dense_forward(x, w_kn, b, *, tm=256, tn=512, tk=512):
    """x: (M, K); w_kn: (K, N); b: (N,)  ->  relu(x @ w_kn + b): (M, N)."""
    M, K = x.shape
    K2, N = w_kn.shape
    assert K == K2 and b.shape == (N,)

    # Clamp tile sizes for small problems (keep (8,128)-aligned, avoid huge
    # zero padding), otherwise use MXU/roofline-friendly 256x512x512 tiles.
    tm = min(tm, _round_up(M, 8))
    tn = min(tn, _round_up(N, 128))
    tk = min(tk, _round_up(K, 128))

    Mp = _round_up(M, tm)
    Np = _round_up(N, tn)
    Kp = _round_up(K, tk)

    # Zero padding is exact: padded-K columns contribute 0 to the dot, padded
    # N columns get bias 0 -> relu(0) = 0, padded M rows / N cols are sliced
    # off below.
    if (Mp, Kp) != (M, K):
        x = jnp.pad(x, ((0, Mp - M), (0, Kp - K)))
    if (Kp, Np) != (K, N):
        w_kn = jnp.pad(w_kn, ((0, Kp - K), (0, Np - N)))
    if Np != N:
        b = jnp.pad(b, (0, Np - N))
    b2d = b.reshape(1, Np)

    grid = (Mp // tm, Np // tn, Kp // tk)

    out = pl.pallas_call(
        dense_kernel,
        out_shape=jax.ShapeDtypeStruct((Mp, Np), x.dtype),
        grid_spec=pltpu.PrefetchScalarGridSpec(
            num_scalar_prefetch=0,
            grid=grid,
            in_specs=[
                pl.BlockSpec((tm, tk), lambda i, j, k: (i, k)),   # x tile
                pl.BlockSpec((tk, tn), lambda i, j, k: (k, j)),   # weight tile
                pl.BlockSpec((1, tn), lambda i, j, k: (0, j)),    # bias tile
            ],
            out_specs=pl.BlockSpec((tm, tn), lambda i, j, k: (i, j)),
            scratch_shapes=[pltpu.VMEM((tm, tn), jnp.float32)],
        ),
        compiler_params=pltpu.CompilerParams(
            dimension_semantics=("parallel", "parallel", "arbitrary"),
            vmem_limit_bytes=64 * 1024 * 1024,
        ),
        cost_estimate=pl.CostEstimate(
            flops=2 * Mp * Np * Kp,
            transcendentals=0,
            bytes_accessed=4 * (Mp * Kp + Kp * Np + Np + Mp * Np),
        ),
    )(x, w_kn, b2d)

    if (Mp, Np) != (M, N):
        out = out[:M, :N]
    return out


class DensePallas:
    """Mirrors torch Dense(input_dim, output_dim): Linear(bias=True) + ReLU.

    Weight is stored pre-transposed as (input_dim, output_dim) so no host-side
    transpose is emitted on the forward path.
    """

    def __init__(self, input_dim, output_dim, key, dropout=0.0):
        # TODO(synk): `dropout` is stored but never applied in the reference
        # torch forward(), so it is intentionally a no-op here too.
        self.dropout = dropout
        self.input_dim = input_dim
        self.output_dim = output_dim

        k_w, k_b = jax.random.split(key)
        # nn.Linear default init: kaiming-uniform(a=sqrt(5)) on W,
        # uniform(-1/sqrt(fan_in), 1/sqrt(fan_in)) on b.
        bound_w = math.sqrt(3.0 / input_dim)
        w_nk = jax.random.uniform(
            k_w, (output_dim, input_dim), jnp.float32, -bound_w, bound_w
        )
        self.weight_kn = jnp.asarray(w_nk.T)          # (K, N), stored once
        bound_b = 1.0 / math.sqrt(input_dim)
        self.bias = jax.random.uniform(
            k_b, (output_dim,), jnp.float32, -bound_b, bound_b
        )

    def __call__(self, x):
        # x: (..., input_dim) -> (..., output_dim)
        lead = x.shape[:-1]
        x2d = x.reshape(-1, self.input_dim)
        y2d = dense_forward(x2d, self.weight_kn, self.bias)
        return y2d.reshape(*lead, self.output_dim)


if __name__ == "__main__":
    key = jax.random.PRNGKey(0)
    k_x, k_p = jax.random.split(key)

    # Ragged shapes on purpose: exercises the padding/cdiv path.
    batch, input_dim, output_dim = 10, 48, 96
    x = jax.random.normal(k_x, (batch, input_dim), jnp.float32)

    layer = DensePallas(input_dim, output_dim, k_p)
    y = layer(x)
    y = jax.block_until_ready(y)

    # Reference check in plain JAX.
    y_ref = jnp.maximum(x @ layer.weight_kn + layer.bias, 0.0)
    assert y.shape == (batch, output_dim)
    assert jnp.allclose(y, y_ref, atol=1e-5, rtol=1e-5)

    print("KERNEL_OK")
</pallas_src>

<mosaic_0001>
module attributes {stable_mosaic.version = 11 : i64} {
  func.func @dense_kernel(%arg0: i32, %arg1: i32, %arg2: i32, %arg3: memref<16x128xf32, #tpu.memory_space<vmem>>, %arg4: memref<128x128xf32, #tpu.memory_space<vmem>>, %arg5: memref<1x128xf32, #tpu.memory_space<vmem>>, %arg6: memref<16x128xf32, #tpu.memory_space<vmem>>, %arg7: memref<16x128xf32, #tpu.memory_space<vmem>>) attributes {dimension_semantics = [#tpu.dimension_semantics<parallel>, #tpu.dimension_semantics<parallel>, #tpu.dimension_semantics<arbitrary>], iteration_bounds = array<i64: 1, 1, 1>, scalar_prefetch = 0 : i64, scratch_operands = 1 : i64, tpu.core_type = #tpu.core_type<tc>, window_params = [{transform_indices = @transform_0, window_bounds = array<i64: 16, 128>}, {transform_indices = @transform_1, window_bounds = array<i64: 128, 128>}, {transform_indices = @transform_2, window_bounds = array<i64: 1, 128>}, {transform_indices = @transform_3, window_bounds = array<i64: 16, 128>}]} {
    %c0_i32 = arith.constant 0 : i32
    %0 = arith.cmpi eq, %arg2, %c0_i32 : i32
    %1 = arith.extui %0 : i1 to i32
    %c0_i32_0 = arith.constant 0 : i32
    %2 = arith.cmpi ne, %1, %c0_i32_0 : i32
    scf.if %2 {
      %cst_10 = arith.constant 0.000000e+00 : f32
      %12 = vector.broadcast %cst_10 : f32 to vector<16x128xf32>
      %c0_11 = arith.constant 0 : index
      %c0_12 = arith.constant 0 : index
      %13 = vector.load %arg7[%c0_11, %c0_12] : memref<16x128xf32, #tpu.memory_space<vmem>>, vector<16x128xf32>
      tpu.vector_store %arg7[%c0_11, %c0_12], %12 {strides = array<i32>} : memref<16x128xf32, #tpu.memory_space<vmem>>, vector<16x128xf32>,
    } else {
    }
    %c0 = arith.constant 0 : index
    %c0_1 = arith.constant 0 : index
    %3 = vector.load %arg7[%c0, %c0_1] : memref<16x128xf32, #tpu.memory_space<vmem>>, vector<16x128xf32>
    %c0_2 = arith.constant 0 : index
    %c0_3 = arith.constant 0 : index
    %4 = vector.load %arg3[%c0_2, %c0_3] : memref<16x128xf32, #tpu.memory_space<vmem>>, vector<16x128xf32>
    %c0_4 = arith.constant 0 : index
    %c0_5 = arith.constant 0 : index
    %5 = vector.load %arg4[%c0_4, %c0_5] : memref<128x128xf32, #tpu.memory_space<vmem>>, vector<128x128xf32>
    %cst = arith.constant dense<0.000000e+00> : vector<16x128xf32>
    %6 = tpu.matmul %4, %5, %cst {dimension_numbers = #tpu.dot_dimension_numbers<[1], [0], [0], [1], [0, 0, 1, 1], [], []>} : vector<16x128xf32>, vector<128x128xf32>, vector<16x128xf32> -> vector<16x128xf32>
    %7 = arith.addf %3, %6 : vector<16x128xf32>
    %c0_6 = arith.constant 0 : index
    %c0_7 = arith.constant 0 : index
    %8 = vector.load %arg7[%c0_6, %c0_7] : memref<16x128xf32, #tpu.memory_space<vmem>>, vector<16x128xf32>
    tpu.vector_store %arg7[%c0_6, %c0_7], %7 {strides = array<i32>} : memref<16x128xf32, #tpu.memory_space<vmem>>, vector<16x128xf32>,
    %c0_i32_8 = arith.constant 0 : i32
    %9 = arith.cmpi eq, %arg2, %c0_i32_8 : i32
    %10 = arith.extui %9 : i1 to i32
    %c0_i32_9 = arith.constant 0 : i32
    %11 = arith.cmpi ne, %10, %c0_i32_9 : i32
    scf.if %11 {
      %c0_10 = arith.constant 0 : index
      %c0_11 = arith.constant 0 : index
      %12 = vector.load %arg7[%c0_10, %c0_11] : memref<16x128xf32, #tpu.memory_space<vmem>>, vector<16x128xf32>
      %c0_12 = arith.constant 0 : index
      %c0_13 = arith.constant 0 : index
      %13 = vector.load %arg5[%c0_12, %c0_13] : memref<1x128xf32, #tpu.memory_space<vmem>>, vector<1x128xf32>
      %14 = vector.broadcast %13 : vector<1x128xf32> to vector<16x128xf32>
      %15 = arith.addf %12, %14 : vector<16x128xf32>
      %cst_14 = arith.constant 0.000000e+00 : f32
      %16 = vector.broadcast %cst_14 : f32 to vector<16x128xf32>
      %17 = arith.maximumf %15, %16 : vector<16x128xf32>
      %c0_15 = arith.constant 0 : index
      %c0_16 = arith.constant 0 : index
      %18 = vector.load %arg6[%c0_15, %c0_16] : memref<16x128xf32, #tpu.memory_space<vmem>>, vector<16x128xf32>
      tpu.vector_store %arg6[%c0_15, %c0_16], %17 {strides = array<i32>} : memref<16x128xf32, #tpu.memory_space<vmem>>, vector<16x128xf32>,
    } else {
    }
    return
  }
  func.func @transform_0(%arg0: i32, %arg1: i32, %arg2: i32) -> (i32, i32) {
    %c0_i32 = arith.constant 0 : i32
    return %arg0, %arg2 : i32, i32
  }
  func.func @transform_1(%arg0: i32, %arg1: i32, %arg2: i32) -> (i32, i32) {
    %c0_i32 = arith.constant 0 : i32
    return %arg2, %arg1 : i32, i32
  }
  func.func @transform_2(%arg0: i32, %arg1: i32, %arg2: i32) -> (i32, i32) {
    %c0_i32 = arith.constant 0 : i32
    %c0_i32_0 = arith.constant 0 : i32
    return %c0_i32, %arg1 : i32, i32
  }
  func.func @transform_3(%arg0: i32, %arg1: i32, %arg2: i32) -> (i32, i32) {
    %c0_i32 = arith.constant 0 : i32
    return %arg0, %arg1 : i32, i32
  }
}

</mosaic_0001>

<llo_original>
// kernel: tpu_custom_call.1
$region0: #{tpu_custom_call.1}
  #allocation0 [shape = 'u32[]', space=smem, size = 0x4, offset = 0x4, fixed_abs, tag = 'smem constant byte address 0x4 - core index']
  #allocation1 [shape = 'u32[144,128]{1,0:T(1,128)}', space=vmem, size = 0x12000, scoped, tag = 'internal scratch']
  #allocation2 [shape = 'f32[16,128]{1,0:T(8,128)}', space=vmem, size = 0x2000, scoped, tag = 'scratch operand']
  %s0 = inlined_call_operand.hbm [shape: f32[16,128], index: 0, kind: input, shape index: {}]
  %s1 = inlined_call_operand.hbm [shape: f32[128,128], index: 1, kind: input, shape index: {}]
  %s2 = inlined_call_operand.hbm [shape: f32[1,128], index: 2, kind: input, shape index: {}]
  %s3 = inlined_call_operand.hbm [shape: f32[16,128], index: 3, kind: output, shape index: {}]
  %s4 = sld [smem:[#allocation0]]
  $region42: #{tpu_custom_call.1} parent=0
    _
  %s6 = ssub.s32 1, %s4
  %s7 = scalar_select 0, %s6, %s4
  $region1: #{tpu_custom_call.1} parent=0
    #allocation3 [shape = 'u8[8192]{0}', space=vmem, size = 0x2000, scoped, tag = 'input window, operand 0, single buffered']
    #allocation4 [shape = 's32[1]{0}', space=sflag, size = 0x4, scoped, tag = 'scoped memory for tpu_custom_call.1']
    #allocation5 [shape = 's32[1]{0}', space=sflag, size = 0x4, scoped, tag = 'scoped memory for tpu_custom_call.1']
    #allocation6 [shape = 'u8[65536]{0}', space=vmem, size = 0x10000, scoped, tag = 'input window, operand 1, single buffered']
    #allocation7 [shape = 's32[1]{0}', space=sflag, size = 0x4, scoped, tag = 'scoped memory for tpu_custom_call.1']
    #allocation8 [shape = 'u8[512]{0}', space=vmem, size = 0x400, scoped, tag = 'input window, operand 2, single buffered']
    #allocation9 [shape = 'u8[8192]{0}', space=vmem, size = 0x2000, scoped, tag = 'output window, operand 0, single buffered']
    %8 = vsyncpa [#allocation4], 0
    %9 = vsyncpa [#allocation7], 0
    %10 = vsyncpa [#allocation5], 0
    // Predicated region
    $region2: #{tpu_custom_call.1} parent=1 // pred_check
      _
    $region3: #{tpu_custom_call.1} parent=1 // pred_check_branch
      %12 = sbr.rel (0) target = $region5
    $region4: #{tpu_custom_call.1} parent=1 // pred_region
      %s14 = ssub.s32 256, 256
      %15 = vsyncadd [#allocation4], %s14
      %s16 = sshll.u32 [#allocation3], 4
      %s17 = int_to_ptr.vmem [resolvable:$true] %s16
      %22 = dma.hbm_to_vmem [thread:$0]  %s0, 256, %s17, [#allocation4], 128, 128, 8
    $region5: #{tpu_custom_call.1} parent=1 // pred_fallthru
      _
    // Predicated region
    $region6: #{tpu_custom_call.1} parent=1 // pred_check
      _
    $region7: #{tpu_custom_call.1} parent=1 // pred_check_branch
      %24 = sbr.rel (0) target = $region9
    $region8: #{tpu_custom_call.1} parent=1 // pred_region
      %s26 = ssub.s32 2048, 2048
      %27 = vsyncadd [#allocation7], %s26
      %s28 = sshll.u32 [#allocation6], 4
      %s29 = int_to_ptr.vmem [resolvable:$true] %s28
      %34 = dma.hbm_to_vmem [thread:$0]  %s1, 2048, %s29, [#allocation7], 128, 128, 8
    $region9: #{tpu_custom_call.1} parent=1 // pred_fallthru
      _
    // Predicated region
    $region10: #{tpu_custom_call.1} parent=1 // pred_check
      _
    $region11: #{tpu_custom_call.1} parent=1 // pred_check_branch
      %36 = sbr.rel (0) target = $region13
    $region12: #{tpu_custom_call.1} parent=1 // pred_region
      %s38 = ssub.s32 16, 16
      %39 = vsyncadd [#allocation7], %s38
      %s41 = sshll.u32 [#allocation8], 4
      %s42 = int_to_ptr.vmem [resolvable:$true] %s41
      %44 = dma.hbm_to_vmem [thread:$0]  %s2, 16, %s42, [#allocation7]
    $region13: #{tpu_custom_call.1} parent=1 // pred_fallthru
      _
    // Predicated region
    $region14: #{tpu_custom_call.1} parent=1 // pred_check
      _
    $region15: #{tpu_custom_call.1} parent=1 // pred_check_branch
      %46 = sbr.rel (0) target = $region17
    $region16: #{tpu_custom_call.1} parent=1 // pred_region
      %47 = dma.done [#allocation4], 256
    $region17: #{tpu_custom_call.1} parent=1 // pred_fallthru
      _
    // Predicated region
    $region18: #{tpu_custom_call.1} parent=1 // pred_check
      _
    $region19: #{tpu_custom_call.1} parent=1 // pred_check_branch
      %49 = sbr.rel (0) target = $region21
    $region20: #{tpu_custom_call.1} parent=1 // pred_region
      %50 = dma.done [#allocation7], 2048
    $region21: #{tpu_custom_call.1} parent=1 // pred_fallthru
      _
    // Predicated region
    $region22: #{tpu_custom_call.1} parent=1 // pred_check
      _
    $region23: #{tpu_custom_call.1} parent=1 // pred_check_branch
      %52 = sbr.rel (0) target = $region25
    $region24: #{tpu_custom_call.1} parent=1 // pred_region
      %53 = dma.done [#allocation7], 16
    $region25: #{tpu_custom_call.1} parent=1 // pred_fallthru
      _
    %p54 = scmp.eq.s32.totalorder 0, 0
    // Predicated region
    $region26: #{tpu_custom_call.1} parent=1 // pred_check
      %p55 = pneg %p54
    $region27: #{tpu_custom_call.1} parent=1 // pred_check_branch
      %57 = sbr.rel (%p55) target = $region29
    $region28: #{tpu_custom_call.1} parent=1 // pred_region
      %58 = vst [vmem:[#allocation2] sm:$0xff] 0.0
      %59 = vst [vmem:[#allocation2 + $0x8] sm:$0xff] 0.0
    $region29: #{tpu_custom_call.1} parent=1 // pred_fallthru
      _
    %v60 = vld [vmem:[#allocation2] sm:$0xff]
    %v61 = vld [vmem:[#allocation2 + $0x8] sm:$0xff]
    %v62 = vld [vmem:[#allocation3] sm:$0xff]
    %v63 = vld [vmem:[#allocation3 + $0x8] sm:$0xff]
    %v64 = vld [vmem:[#allocation6] sm:$0xff]
    %v65 = vld [vmem:[#allocation6 + $0x8] sm:$0xff]
    %v66 = vld [vmem:[#allocation6 + $0x10] sm:$0xff]
    %v67 = vld [vmem:[#allocation6 + $0x18] sm:$0xff]
    %v68 = vld [vmem:[#allocation6 + $0x20] sm:$0xff]
    %v69 = vld [vmem:[#allocation6 + $0x28] sm:$0xff]
    %v70 = vld [vmem:[#allocation6 + $0x30] sm:$0xff]
    %v71 = vld [vmem:[#allocation6 + $0x38] sm:$0xff]
    %v72 = vld [vmem:[#allocation6 + $0x40] sm:$0xff]
    %v73 = vld [vmem:[#allocation6 + $0x48] sm:$0xff]
    %v74 = vld [vmem:[#allocation6 + $0x50] sm:$0xff]
    %v75 = vld [vmem:[#allocation6 + $0x58] sm:$0xff]
    %v76 = vld [vmem:[#allocation6 + $0x60] sm:$0xff]
    %v77 = vld [vmem:[#allocation6 + $0x68] sm:$0xff]
    %v78 = vld [vmem:[#allocation6 + $0x70] sm:$0xff]
    %v79 = vld [vmem:[#allocation6 + $0x78] sm:$0xff]
    %80 = vmatprep.subr.mxu0 0.0
    %81 = vmatpush1.msra.mxu0 %v64
    %82 = vmatprep.subr.mxu0 0.0
    %83 = vmatpush1.msra.mxu0 %v65
    %84 = vmatprep.subr.mxu0 0.0
    %85 = vmatpush1.msra.mxu0 %v66
    %86 = vmatprep.subr.mxu0 0.0
    %87 = vmatpush1.msra.mxu0 %v67
    %88 = vmatprep.subr.mxu0 0.0
    %89 = vmatpush1.msra.mxu0 %v68
    %90 = vmatprep.subr.mxu0 0.0
    %91 = vmatpush1.msra.mxu0 %v69
    %92 = vmatprep.subr.mxu0 0.0
    %93 = vmatpush1.msra.mxu0 %v70
    %94 = vmatprep.subr.mxu0 0.0
    %95 = vmatpush1.msra.mxu0 %v71
    %96 = vmatprep.subr.mxu0 0.0
    %97 = vmatpush1.msra.mxu0 %v72
    %98 = vmatprep.subr.mxu0 0.0
    %99 = vmatpush1.msra.mxu0 %v73
    %100 = vmatprep.subr.mxu0 0.0
    %101 = vmatpush1.msra.mxu0 %v74
    %102 = vmatprep.subr.mxu0 0.0
    %103 = vmatpush1.msra.mxu0 %v75
    %104 = vmatprep.subr.mxu0 0.0
    %105 = vmatpush1.msra.mxu0 %v76
    %106 = vmatprep.subr.mxu0 0.0
    %107 = vmatpush1.msra.mxu0 %v77
    %108 = vmatprep.subr.mxu0 0.0
    %109 = vmatpush1.msra.mxu0 %v78
    %110 = vmatprep.subr.mxu0 0.0
    %111 = vmatpush1.msra.mxu0 %v79
    %112 = vmatprep.subr.mxu0 0.0
    %113 = vmatpush1.msra.mxu0 0.0
    %114 = vmatprep.subr.mxu0 0.0
    %115 = vmatpush1.msra.mxu0 0.0
    %116 = vmatprep.subr.mxu0 0.0
    %117 = vmatpush1.msra.mxu0 0.0
    %118 = vmatprep.subr.mxu0 0.0
    %119 = vmatpush1.msra.mxu0 0.0
    %120 = vmatprep.subr.mxu0 0.0
    %121 = vmatpush1.msra.mxu0 0.0
    %122 = vmatprep.subr.mxu0 0.0
    %123 = vmatpush1.msra.mxu0 0.0
    %124 = vmatprep.subr.mxu0 0.0
    %125 = vmatpush1.msra.mxu0 0.0
    %126 = vmatprep.subr.mxu0 0.0
    %127 = vmatpush1.msra.mxu0 0.0
    %128 = vmatprep.subr.mxu0 0.0
    %129 = vmatpush1.msra.mxu0 0.0
    %130 = vmatprep.subr.mxu0 0.0
    %131 = vmatpush1.msra.mxu0 0.0
    %132 = vmatprep.subr.mxu0 0.0
    %133 = vmatpush1.msra.mxu0 0.0
    %134 = vmatprep.subr.mxu0 0.0
    %135 = vmatpush1.msra.mxu0 0.0
    %136 = vmatprep.subr.mxu0 0.0
    %137 = vmatpush1.msra.mxu0 0.0
    %138 = vmatprep.subr.mxu0 0.0
    %139 = vmatpush1.msra.mxu0 0.0
    %140 = vmatprep.subr.mxu0 0.0
    %141 = vmatpush1.msra.mxu0 0.0
    %142 = vmatprep.subr.mxu0 0.0
    %143 = vmatpush1.msra.mxu0 0.0
    %144 = vmatprep.mubr.f32.mxu0 0.0
    %145 = vmatmul.mubr.f32.gmra.mrb[0].mxu0 %v62
    %v146 = vpop.f32.mrb[0].mxu0
    %v147 = vadd.f32 0.0, %v146
    %v148 = vpop.f32.mrb[0].mxu0
    %149 = vmatprep.mubr.f32.mxu0 0.0
    %150 = vmatmul.mubr.f32.gmra.mrb[0].mxu0 %v63
    %v151 = vpop.f32.mrb[0].mxu0
    %v152 = vadd.f32 0.0, %v151
    %v153 = vpop.f32.mrb[0].mxu0
    %154 = vdwg.mxu0
    %v155 = vadd.f32 %v60, %v147
    %v156 = vadd.f32 %v61, %v152
    %157 = vst [vmem:[#allocation2] sm:$0xff] %v155
    %158 = vst [vmem:[#allocation2 + $0x8] sm:$0xff] %v156
    // Predicated region
    $region30: #{tpu_custom_call.1} parent=1 // pred_check
      %p159 = pneg %p54
    $region31: #{tpu_custom_call.1} parent=1 // pred_check_branch
      %161 = sbr.rel (%p159) target = $region33
    $region32: #{tpu_custom_call.1} parent=1 // pred_region
      %v162 = vld [vmem:[#allocation2] sm:$0xff]
      %v163 = vld [vmem:[#allocation2 + $0x8] sm:$0xff]
      %v164 = vld [vmem:[#allocation8] sm:$0x1]
      %v166 = vlaneseq
      %v167 = vshrl.u32 %v166, 7
      %v168 = vsub.s32 0, %v167
      %v169 = vrot.slane %v164, %v168
      %v171 = vadd.f32 %v162, %v169
      %v172 = vadd.f32 %v163, %v169
      %v173 = vmax.f32 %v171, 0.0
      %v174 = vmax.f32 %v172, 0.0
      %175 = vst [vmem:[#allocation9] sm:$0xff] %v173
      %176 = vst [vmem:[#allocation9 + $0x8] sm:$0xff] %v174
    $region33: #{tpu_custom_call.1} parent=1 // pred_fallthru
      _
    // Predicated region
    $region34: #{tpu_custom_call.1} parent=1 // pred_check
      _
    $region35: #{tpu_custom_call.1} parent=1 // pred_check_branch
      %178 = sbr.rel (0) target = $region37
    $region36: #{tpu_custom_call.1} parent=1 // pred_region
      %s180 = ssub.s32 256, 256
      %181 = vsyncadd [#allocation5], %s180
      %s182 = sshll.u32 [#allocation9], 4
      %s183 = int_to_ptr.vmem [resolvable:$true] %s182
      %188 = dma.vmem_to_hbm [thread:$0]  %s183, 256, %s3, [#allocation5], 128, 128, 8
    $region37: #{tpu_custom_call.1} parent=1 // pred_fallthru
      _
    // Predicated region
    $region38: #{tpu_custom_call.1} parent=1 // pred_check
      _
    $region39: #{tpu_custom_call.1} parent=1 // pred_check_branch
      %190 = sbr.rel (0) target = $region41
    $region40: #{tpu_custom_call.1} parent=1 // pred_region
      %191 = dma.done [#allocation5], 256
    $region41: #{tpu_custom_call.1} parent=1 // pred_fallthru
      _
    %192 = vsyncpa [#allocation4], 1
    %193 = vsyncpa [#allocation7], 1
    %194 = vsyncpa [#allocation5], 1

</llo_original>
